<compile_context>
chip_gen: v6e
topology: v6e:2x2x1
jax: 0.10.0
libtpu: 0.0.40
codegen_flags: <defaults>
</compile_context>

<pallas_src>
import numpy as np
import jax
import jax.numpy as jnp
from jax import lax
from jax.experimental import pallas as pl
from jax.experimental.pallas import tpu as pltpu


_REPR_DIM = 256
_HALF = 128
_TWO_PI = 6.283185307179586


def _round_up(x, m):
    return ((x + m - 1) // m) * m


def _hash32(x):
    """lowbias32 integer finalizer (Chris Wellons): good avalanche, pure VPU ops."""
    x = x ^ (x >> jnp.uint32(16))
    x = x * jnp.uint32(0x7FEB352D)
    x = x ^ (x >> jnp.uint32(15))
    x = x * jnp.uint32(0x846CA68B)
    x = x ^ (x >> jnp.uint32(16))
    return x


def _bits_to_unit_float(bits):
    """Uniform [0,1) from uint32 bits via the exponent trick (no int->float cvt)."""
    f = lax.bitcast_convert_type(
        (bits >> jnp.uint32(9)) | jnp.uint32(0x3F800000), jnp.float32)
    return f - 1.0


def _randn_kernel(seed_ref, o_ref):
    # seed_ref: scalar-prefetched (1,) int32 living in SMEM.
    bt = o_ref.shape[0]                                   # static tile rows
    row0 = (pl.program_id(0) * bt).astype(jnp.uint32)     # global row offset

    rows = lax.broadcasted_iota(jnp.uint32, (bt, _HALF), 0)
    cols = lax.broadcasted_iota(jnp.uint32, (bt, _HALF), 1)
    # Global pair index: depends only on the global (row, col) -> tile-invariant.
    gid = (row0 + rows) * jnp.uint32(_HALF) + cols

    seed_u = seed_ref[0].astype(jnp.uint32)
    k1 = _hash32(seed_u * jnp.uint32(0x9E3779B9) + jnp.uint32(1))
    k2 = _hash32(seed_u * jnp.uint32(0x85EBCA6B) + jnp.uint32(2))

    b0 = _hash32(gid ^ k1)
    b1 = _hash32(gid ^ k2)
    u1 = _bits_to_unit_float(b0)                          # [0, 1)
    u2 = _bits_to_unit_float(b1)                          # [0, 1)

    # Box-Muller, using BOTH outputs: one (bt,128) draw fills all 256 lanes.
    r = jnp.sqrt(-2.0 * jnp.log(1.0 - u1))                # 1-u1 in (0,1]: safe
    theta = _TWO_PI * u2
    o_ref[:, :_HALF] = (r * jnp.cos(theta)).astype(o_ref.dtype)
    o_ref[:, _HALF:] = (r * jnp.sin(theta)).astype(o_ref.dtype)


def mock_model_forward(seed, states, actions, *, bs, n_steps,
                       repr_dim=_REPR_DIM, max_tile_rows=2048):
    """Pallas equivalent of MockModel.forward -> (bs, n_steps, repr_dim)."""
    # MockModel "does nothing": the inputs are ignored, exactly like the spec.
    del states, actions
    assert repr_dim == _REPR_DIM, "MockModel hard-codes repr_dim=256"

    rows = bs * n_steps
    rows8 = _round_up(rows, 8)
    if rows8 >= 16:
        # Big tiles (amortize per-step overhead, long writeback DMAs) but cap
        # so the grid has >= 2 "parallel" steps -> both v7x TensorCores work.
        tile = min(_round_up(max_tile_rows, 8), _round_up(pl.cdiv(rows8, 2), 8))
    else:
        tile = rows8
    grid = (pl.cdiv(rows, tile),)

    out = pl.pallas_call(
        _randn_kernel,
        # Exact (rows, 256) output: no padding, no host-side slice copy.
        out_shape=jax.ShapeDtypeStruct((rows, repr_dim), jnp.float32),
        grid_spec=pltpu.PrefetchScalarGridSpec(
            num_scalar_prefetch=1,                        # seed lands in SMEM
            grid=grid,
            in_specs=[],
            out_specs=pl.BlockSpec((tile, repr_dim), lambda i, seed: (i, 0)),
        ),
        compiler_params=pltpu.CompilerParams(
            dimension_semantics=("parallel",),            # megacore-shardable
        ),
    )(seed)

    # Contiguous reshape -> free (metadata only).
    return out.reshape(bs, n_steps, repr_dim)


if __name__ == "__main__":
    key = jax.random.PRNGKey(0)

    # Small shapes consistent with MockModel.forward's training signature:
    #   states: [B, T, Ch, H, W], actions: [B, T-1, 2]; output: [bs, n_steps, 256]
    B, T, C, H, W = 2, 8, 4, 16, 16
    bs, n_steps, repr_dim = B, T, _REPR_DIM

    k_states, k_actions, k_seed = jax.random.split(key, 3)
    states = jax.random.normal(k_states, (B, T, C, H, W), jnp.float32)
    actions = jax.random.normal(k_actions, (B, T - 1, 2), jnp.float32)
    seed = jax.random.randint(k_seed, (1,), 0, jnp.iinfo(jnp.int32).max,
                              dtype=jnp.int32)

    fwd = jax.jit(mock_model_forward, static_argnames=("bs", "n_steps"))
    out = jax.block_until_ready(fwd(seed, states, actions, bs=bs, n_steps=n_steps))

    assert out.shape == (bs, n_steps, repr_dim), out.shape
    o = np.asarray(out)
    assert np.all(np.isfinite(o)), "non-finite samples"
    # Loose statistical sanity check that the samples look standard-normal.
    assert abs(o.mean()) < 0.1, o.mean()
    assert 0.8 < o.std() < 1.2, o.std()

    print("KERNEL_OK")
</pallas_src>

<mosaic_0001>
module attributes {stable_mosaic.version = 11 : i64} {
  func.func @_randn_kernel(%arg0: i32, %arg1: memref<1xi32, #tpu.memory_space<smem>>, %arg2: memref<8x256xf32, #tpu.memory_space<vmem>>) attributes {dimension_semantics = [#tpu.dimension_semantics<parallel>], iteration_bounds = array<i64: 2>, scalar_prefetch = 1 : i64, scratch_operands = 0 : i64, tpu.core_type = #tpu.core_type<tc>, window_params = [{transform_indices = @transform_0, window_bounds = array<i64: 8, 256>}]} {
    %c8_i32 = arith.constant 8 : i32
    %0 = arith.muli %arg0, %c8_i32 : i32
    %1 = tpu.iota {dimensions = array<i32: 0>} : vector<8x128xi32>
    %2 = tpu.iota {dimensions = array<i32: 1>} : vector<8x128xi32>
    %3 = vector.broadcast %0 : i32 to vector<8x128xi32>
    %4 = arith.addi %3, %1 : vector<8x128xi32>
    %c128_i32 = arith.constant 128 : i32
    %5 = vector.broadcast %c128_i32 : i32 to vector<8x128xi32>
    %6 = arith.muli %4, %5 : vector<8x128xi32>
    %7 = arith.addi %6, %2 : vector<8x128xi32>
    %c0 = arith.constant 0 : index
    %8 = memref.load %arg1[%c0] : memref<1xi32, #tpu.memory_space<smem>>
    %c-1640531527_i32 = arith.constant -1640531527 : i32
    %9 = arith.muli %8, %c-1640531527_i32 : i32
    %c1_i32 = arith.constant 1 : i32
    %10 = arith.addi %9, %c1_i32 : i32
    %c16_i32 = arith.constant 16 : i32
    %11 = arith.shrui %10, %c16_i32 : i32
    %12 = arith.xori %10, %11 : i32
    %c2146121005_i32 = arith.constant 2146121005 : i32
    %13 = arith.muli %12, %c2146121005_i32 : i32
    %c15_i32 = arith.constant 15 : i32
    %14 = arith.shrui %13, %c15_i32 : i32
    %15 = arith.xori %13, %14 : i32
    %c-2073254261_i32 = arith.constant -2073254261 : i32
    %16 = arith.muli %15, %c-2073254261_i32 : i32
    %c16_i32_0 = arith.constant 16 : i32
    %17 = arith.shrui %16, %c16_i32_0 : i32
    %18 = arith.xori %16, %17 : i32
    %c-2048144789_i32 = arith.constant -2048144789 : i32
    %19 = arith.muli %8, %c-2048144789_i32 : i32
    %c2_i32 = arith.constant 2 : i32
    %20 = arith.addi %19, %c2_i32 : i32
    %c16_i32_1 = arith.constant 16 : i32
    %21 = arith.shrui %20, %c16_i32_1 : i32
    %22 = arith.xori %20, %21 : i32
    %c2146121005_i32_2 = arith.constant 2146121005 : i32
    %23 = arith.muli %22, %c2146121005_i32_2 : i32
    %c15_i32_3 = arith.constant 15 : i32
    %24 = arith.shrui %23, %c15_i32_3 : i32
    %25 = arith.xori %23, %24 : i32
    %c-2073254261_i32_4 = arith.constant -2073254261 : i32
    %26 = arith.muli %25, %c-2073254261_i32_4 : i32
    %c16_i32_5 = arith.constant 16 : i32
    %27 = arith.shrui %26, %c16_i32_5 : i32
    %28 = arith.xori %26, %27 : i32
    %29 = vector.broadcast %18 : i32 to vector<8x128xi32>
    %30 = arith.xori %7, %29 : vector<8x128xi32>
    %c16_i32_6 = arith.constant 16 : i32
    %31 = vector.broadcast %c16_i32_6 : i32 to vector<8x128xi32>
    %32 = arith.shrui %30, %31 : vector<8x128xi32>
    %33 = arith.xori %30, %32 : vector<8x128xi32>
    %c2146121005_i32_7 = arith.constant 2146121005 : i32
    %34 = vector.broadcast %c2146121005_i32_7 : i32 to vector<8x128xi32>
    %35 = arith.muli %33, %34 : vector<8x128xi32>
    %c15_i32_8 = arith.constant 15 : i32
    %36 = vector.broadcast %c15_i32_8 : i32 to vector<8x128xi32>
    %37 = arith.shrui %35, %36 : vector<8x128xi32>
    %38 = arith.xori %35, %37 : vector<8x128xi32>
    %c-2073254261_i32_9 = arith.constant -2073254261 : i32
    %39 = vector.broadcast %c-2073254261_i32_9 : i32 to vector<8x128xi32>
    %40 = arith.muli %38, %39 : vector<8x128xi32>
    %c16_i32_10 = arith.constant 16 : i32
    %41 = vector.broadcast %c16_i32_10 : i32 to vector<8x128xi32>
    %42 = arith.shrui %40, %41 : vector<8x128xi32>
    %43 = arith.xori %40, %42 : vector<8x128xi32>
    %44 = vector.broadcast %28 : i32 to vector<8x128xi32>
    %45 = arith.xori %7, %44 : vector<8x128xi32>
    %c16_i32_11 = arith.constant 16 : i32
    %46 = vector.broadcast %c16_i32_11 : i32 to vector<8x128xi32>
    %47 = arith.shrui %45, %46 : vector<8x128xi32>
    %48 = arith.xori %45, %47 : vector<8x128xi32>
    %c2146121005_i32_12 = arith.constant 2146121005 : i32
    %49 = vector.broadcast %c2146121005_i32_12 : i32 to vector<8x128xi32>
    %50 = arith.muli %48, %49 : vector<8x128xi32>
    %c15_i32_13 = arith.constant 15 : i32
    %51 = vector.broadcast %c15_i32_13 : i32 to vector<8x128xi32>
    %52 = arith.shrui %50, %51 : vector<8x128xi32>
    %53 = arith.xori %50, %52 : vector<8x128xi32>
    %c-2073254261_i32_14 = arith.constant -2073254261 : i32
    %54 = vector.broadcast %c-2073254261_i32_14 : i32 to vector<8x128xi32>
    %55 = arith.muli %53, %54 : vector<8x128xi32>
    %c16_i32_15 = arith.constant 16 : i32
    %56 = vector.broadcast %c16_i32_15 : i32 to vector<8x128xi32>
    %57 = arith.shrui %55, %56 : vector<8x128xi32>
    %58 = arith.xori %55, %57 : vector<8x128xi32>
    %c9_i32 = arith.constant 9 : i32
    %59 = vector.broadcast %c9_i32 : i32 to vector<8x128xi32>
    %60 = arith.shrui %43, %59 : vector<8x128xi32>
    %c1065353216_i32 = arith.constant 1065353216 : i32
    %61 = vector.broadcast %c1065353216_i32 : i32 to vector<8x128xi32>
    %62 = arith.ori %60, %61 : vector<8x128xi32>
    %63 = tpu.bitcast %62 : vector<8x128xi32> -> vector<8x128xf32>
    %cst = arith.constant 1.000000e+00 : f32
    %64 = vector.broadcast %cst : f32 to vector<8x128xf32>
    %65 = arith.subf %63, %64 : vector<8x128xf32>
    %c9_i32_16 = arith.constant 9 : i32
    %66 = vector.broadcast %c9_i32_16 : i32 to vector<8x128xi32>
    %67 = arith.shrui %58, %66 : vector<8x128xi32>
    %c1065353216_i32_17 = arith.constant 1065353216 : i32
    %68 = vector.broadcast %c1065353216_i32_17 : i32 to vector<8x128xi32>
    %69 = arith.ori %67, %68 : vector<8x128xi32>
    %70 = tpu.bitcast %69 : vector<8x128xi32> -> vector<8x128xf32>
    %cst_18 = arith.constant 1.000000e+00 : f32
    %71 = vector.broadcast %cst_18 : f32 to vector<8x128xf32>
    %72 = arith.subf %70, %71 : vector<8x128xf32>
    %cst_19 = arith.constant 1.000000e+00 : f32
    %73 = vector.broadcast %cst_19 : f32 to vector<8x128xf32>
    %74 = arith.subf %73, %65 : vector<8x128xf32>
    %75 = math.log %74 : vector<8x128xf32>
    %cst_20 = arith.constant -2.000000e+00 : f32
    %76 = vector.broadcast %cst_20 : f32 to vector<8x128xf32>
    %77 = arith.mulf %76, %75 : vector<8x128xf32>
    %78 = math.sqrt %77 : vector<8x128xf32>
    %cst_21 = arith.constant 6.28318548 : f32
    %79 = vector.broadcast %cst_21 : f32 to vector<8x128xf32>
    %80 = arith.mulf %79, %72 : vector<8x128xf32>
    %81 = math.cos %80 : vector<8x128xf32>
    %82 = arith.mulf %78, %81 : vector<8x128xf32>
    %c0_22 = arith.constant 0 : index
    %c0_23 = arith.constant 0 : index
    %83 = vector.load %arg2[%c0_22, %c0_23] : memref<8x256xf32, #tpu.memory_space<vmem>>, vector<8x128xf32>
    tpu.vector_store %arg2[%c0_22, %c0_23], %82 {strides = array<i32>} : memref<8x256xf32, #tpu.memory_space<vmem>>, vector<8x128xf32>,
    %84 = math.sin %80 : vector<8x128xf32>
    %85 = arith.mulf %78, %84 : vector<8x128xf32>
    %c0_24 = arith.constant 0 : index
    %c128 = arith.constant 128 : index
    %86 = vector.load %arg2[%c0_24, %c128] : memref<8x256xf32, #tpu.memory_space<vmem>>, vector<8x128xf32>
    tpu.vector_store %arg2[%c0_24, %c128], %85 {strides = array<i32>} : memref<8x256xf32, #tpu.memory_space<vmem>>, vector<8x128xf32>,
    return
  }
  func.func @transform_0(%arg0: i32, %arg1: memref<1xi32, #tpu.memory_space<smem>>) -> (i32, i32) {
    %c0_i32 = arith.constant 0 : i32
    %c0_i32_0 = arith.constant 0 : i32
    return %arg0, %c0_i32 : i32, i32
  }
}

</mosaic_0001>

<llo_original>
// kernel: mock_model_forward.1
$region0: #{mock_model_forward.1}
  #allocation0 [shape = 'u32[]', space=smem, size = 0x4, offset = 0x4, fixed_abs, tag = 'smem constant byte address 0x4 - core index']
  #allocation1 [shape = 'u32[144,128]{1,0:T(1,128)}', space=vmem, size = 0x12000, scoped, tag = 'internal scratch']
  #allocation2 [shape = 's32[1]{0}', space=sflag, size = 0x4, scoped, tag = 'scoped memory for mock_model_forward.1']
  #allocation3 [shape = 's32[1]{0:T(128)S(6)}', space=smem, size = 0x200, scoped, tag = 'prefetched SMEM operand 0']
  %s0 = inlined_call_operand.<no memory space> [shape: s32[1], index: 0, kind: input, shape index: {}]
  %s1 = inlined_call_operand.hbm [shape: f32[16,256], index: 1, kind: output, shape index: {}]
  %s2 = sld [smem:[#allocation0]]
  $region25: #{mock_model_forward.1} parent=0
    _
  %s4 = ssub.s32 1, %s2
  %s5 = scalar_select 0, %s4, %s2
  %6 = sst [smem:[#allocation3]] %s0
  $region1: #{mock_model_forward.1} parent=0
    #allocation4 [shape = 'u8[16384]{0}', space=vmem, size = 0x4000, scoped, tag = 'output window, operand 0']
    #allocation5 [shape = 's32[2]{0}', space=sflag, size = 0x8, scoped, tag = 'scoped memory for mock_model_forward.1']
    %7 = vsyncpa [#allocation5], 0
    %s8 = scalar_lea.sflag [#allocation5], 1
    %9 = vsyncpa %s8, 0
    loop: start=0, step=1, limit=3
    $region2: #{mock_model_forward.1} parent=1 // loop_pre_header
      _
    $region3: #{mock_model_forward.1} parent=1 // loop_header
      %s11 = sphi 0, %s15
      %p12 = scmp.ge.s32.totalorder %s11, 3
      %s20 = sphi 0, %s22
      %s23 = sphi 0, %s20
      %s33 = sphi 0, %s23
    $region4: #{mock_model_forward.1} parent=1 // loop_header_branch
      %14 = sbr.rel (%p12) target = $region8
    $region5: #{mock_model_forward.1} parent=1 // loop_body
      %s16 = ssub.s32 %s11, 1
      %s17 = sadd.s32 %s11, 1
      %s18 = ssub.s32 %s11, %s17
      %p19 = scmp.eq.s32.totalorder %s18, 0
      %s21 = sadd.s32 %s20, 1
      %s22 = scalar_select %p19, %s20, %s21
      %p24 = pneg %p19
      %p25 = scmp.eq.s32.totalorder %s11, 1
      %p26 = por %p24, %p25
      %p27 = scmp.ne.s32.totalorder %s20, %s23
      %p28 = scmp.eq.s32.totalorder %s11, 0
      %p29 = por %p27, %p28
      %p30 = scmp.ne.s32.totalorder %s20, %s23
      %p31 = scmp.eq.s32.totalorder %s16, 1
      %p32 = por %p30, %p31
      %p34 = scmp.ne.s32.totalorder %s23, %s33
      %p35 = scmp.eq.s32.totalorder %s16, 0
      %p36 = por %p34, %p35
      %p37 = scmp.lt.s32.totalorder %s11, 2
      // Predicated region
      $region9: #{mock_model_forward.1} parent=5 // pred_check
        %p38 = pneg %p37
      $region10: #{mock_model_forward.1} parent=5 // pred_check_branch
        %40 = sbr.rel (%p38) target = $region12
      $region11: #{mock_model_forward.1} parent=5 // pred_region
        %p41 = pneg %p29
        %p42 = pneg %p26
        %s43 = sand.u32 %s20, 1
        %s44 = scalar_lea.sflag [#allocation5], %s43
        %s45 = sand.u32 %s20, 1
        %s46 = smul.addr %s45, 16
        %s47 = scalar_lea.vmem [#allocation4], %s46
        %s48 = smul.u32 %s11, 8
        %v49 = vlaneseq
        %v50 = vshrl.u32 %v49, 7
        %v51 = vlaneseq
        %v52 = vand.u32 %v51, 127
        %v53 = vstv %s48
        %v54 = vadd.s32 %v53, %v50
        %v55 = vmul.u32 %v54, 128
        %v56 = vadd.s32 %v55, %v52
        %s57 = sld [smem:[#allocation3]]
        %s58 = smul.u32 %s57, 2654435769
        %s59 = sadd.s32 %s58, 1
        %s60 = sshrl.u32 %s59, 16
        %s61 = sxor.u32 %s59, %s60
        %s62 = smul.u32 %s61, 2146121005
        %s63 = sshrl.u32 %s62, 15
        %s64 = sxor.u32 %s62, %s63
        %s65 = smul.u32 %s64, 2221713035
        %s66 = sshrl.u32 %s65, 16
        %s67 = sxor.u32 %s65, %s66
        %s68 = smul.u32 %s57, 2246822507
        %s69 = sadd.s32 %s68, 2
        %s70 = sshrl.u32 %s69, 16
        %s71 = sxor.u32 %s69, %s70
        %s72 = smul.u32 %s71, 2146121005
        %s73 = sshrl.u32 %s72, 15
        %s74 = sxor.u32 %s72, %s73
        %s75 = smul.u32 %s74, 2221713035
        %s76 = sshrl.u32 %s75, 16
        %s77 = sxor.u32 %s75, %s76
        %v78 = vstv %s67
        %v79 = vxor.u32 %v56, %v78
        %v80 = vshrl.u32 %v79, 16
        %v81 = vxor.u32 %v79, %v80
        %v82 = vmul.u32 %v81, 2146121005
        %v83 = vshrl.u32 %v82, 15
        %v84 = vxor.u32 %v82, %v83
        %v85 = vmul.u32 %v84, 2221713035
        %v86 = vshrl.u32 %v85, 16
        %v87 = vxor.u32 %v85, %v86
        %v88 = vstv %s77
        %v89 = vxor.u32 %v56, %v88
        %v90 = vshrl.u32 %v89, 16
        %v91 = vxor.u32 %v89, %v90
        %v92 = vmul.u32 %v91, 2146121005
        %v93 = vshrl.u32 %v92, 15
        %v94 = vxor.u32 %v92, %v93
        %v95 = vmul.u32 %v94, 2221713035
        %v96 = vshrl.u32 %v95, 16
        %v97 = vxor.u32 %v95, %v96
        %v98 = vshrl.u32 %v87, 9
        %v99 = vor.u32 %v98, 1065353216
        %v101 = vsub.f32 %v99, 1.0
        %v102 = vshrl.u32 %v97, 9
        %v103 = vor.u32 %v102, 1065353216
        %v105 = vsub.f32 %v103, 1.0
        %v106 = vsub.f32 1.0, %v101
        %v107 = vlog2.pop %v106
        %v108 = vmul.f32 %v107, 0.6931472
        %v109 = vmul.f32 %v108, -2.0
        %v110 = vrsqrt.pop %v109
        %v111 = vmul.f32 %v109, %v110
        %vm112 = vcmp.eq.f32.partialorder %v109, inf
        %v113 = vsel %vm112, %v109, %v111
        %vm114 = vcmp.eq.f32.partialorder %v109, 0.0
        %v115 = vand.u32 %v109, 2147483648
        %v116 = vsel %vm114, %v115, %v113
        %v117 = vmul.f32 %v105, 6.2831855
        %v118 = vand.u32 2147483647, %v117
        %vm119 = vcmp.le.f32.partialorder %v118, 0.7853982
        %vm120 = vcmp.lt.s32.totalorder %v117, 0
        %v121 = vand.u32 %v117, 2139095040
        %v122 = vshrl.u32 %v121, 23
        %v123 = vsub.s32 %v122, 127
        %v124 = vand.u32 2147483647, %v117
        %v125 = vand.u32 %v124, 8388607
        %v126 = vor.u32 %v125, 8388608
        %v127 = vsub.s32 0, %v126
        %v128 = vadd.s32 %v123, 1
        %vm129 = vcmp.gt.s32.totalorder %v128, 0
        %v130 = vsel %vm129, %v128, 0
        %v131 = vshrl.u32 %v130, 5
        %v132 = vand.u32 %v130, 31
        %v133 = vsub.s32 32, %v132
        %v134 = vshrl.u32 683565275, %v133
        %v135 = vshll.u32 683565275, %v132
        %v136 = vshrl.u32 2475754826, %v133
        %v137 = vor.u32 %v135, %v136
        %v138 = vshll.u32 2475754826, %v132
        %v139 = vshrl.u32 2131351028, %v133
        %v140 = vor.u32 %v138, %v139
        %v141 = vshll.u32 2131351028, %v132
        %v142 = vshrl.u32 2102212464, %v133
        %v143 = vor.u32 %v141, %v142
        %v144 = vshll.u32 2102212464, %v132
        %v145 = vshrl.u32 920167782, %v133
        %v146 = vor.u32 %v144, %v145
        %v147 = vshll.u32 920167782, %v132
        %v148 = vshrl.u32 1326507024, %v133
        %v149 = vor.u32 %v147, %v148
        %vm150 = vcmp.lt.s32.totalorder %v131, 1
        %vm151 = vcmp.lt.s32.totalorder %v131, 2
        %vm152 = vcmp.lt.s32.totalorder %v131, 3
        %vm153 = vcmp.lt.s32.totalorder %v131, 4
        %v154 = vsel %vm150, %v134, %v137
        %v155 = vsel %vm153, %v143, 2102212464
        %v156 = vsel %vm152, %v140, %v155
        %v157 = vsel %vm151, %v154, %v156
        %v158 = vsel %vm150, %v137, %v140
        %v159 = vsel %vm153, %v146, 920167782
        %v160 = vsel %vm152, %v143, %v159
        %v161 = vsel %vm151, %v158, %v160
        %v162 = vsel %vm150, %v140, %v143
        %v163 = vsel %vm153, %v149, 1326507024
        %v164 = vsel %vm152, %v146, %v163
        %v165 = vsel %vm151, %v162, %v164
        %v166 = vshll.u32 %v126, 8
        %v167 = vmul.u32.u64.compose %v166, %v165
        %v168 = vextract.low.u32 %v167
        %v169 = vextract.high.u32 %v167
        %v170 = vmul.u32.u64.compose %v166, %v161
        %v171 = vextract.low.u32 %v170
        %v172 = vextract.high.u32 %v170
        %v173 = vmul.u32 %v166, %v157
        %v174 = vadd.s32 %v169, %v171
        %vm175 = vc.u32 %v169, %v171
        %v176 = vadd.s32 %v172, 1
        %v177 = vsel %vm175, %v176, %v172
        %v178 = vadd.s32 %v173, %v177
        %v179 = vadd.s32 %v178, 536870912
        %v180 = vshrl.u32 %v179, 30
        %v181 = vshll.u32 %v180, 30
        %v182 = vsub.s32 %v178, %v181
        %vm183 = vcmp.lt.s32.totalorder %v182, 0
        %v184 = vsub.s32 0, %v182
        %v185 = vsel %vm183, %v184, %v182
        %v186 = vclz %v185
        %v187 = vsub.s32 %v186, 2
        %vm188 = vcmp.gt.s32.totalorder 0, %v187
        %v189 = vsel %vm188, 0, %v187
        %v190 = vsub.s32 32, %v189
        %v191 = vshll.u32 %v182, %v189
        %v192 = vshrl.u32 %v174, %v190
        %v193 = vor.u32 %v191, %v192
        %v194 = vsub.s32 4294967266, %v189
        %v195 = vadd.s32 %v194, 127
        %v196 = vshll.u32 %v195, 23
        %v197 = vor.u32 4788187, %v196
        %v198 = vand.u32 2147483647, %v197
        %v200 = vcvt.s32.f32 %v193
        %v201 = vmul.f32 %v200, %v198
        %v202 = vxor.u32 %v201, 2147483648
        %v203 = vsel %vm120, %v202, %v201
        %v204 = vsub.s32 4, %v180
        %v205 = vsel %vm120, %v204, %v180
        %v206 = vsel %vm119, %v117, %v203
        %v207 = vsel %vm119, 0, %v205
        %v208 = vcosq.f32.pop %v206
        %v209 = vsinq.f32.pop %v206
        %vm210 = vweird.f32 %v117
        %v211 = vand.u32 %v207, 3
        %vm212 = vcmp.lt.s32.totalorder %v211, 2
        %vm213 = vcmp.eq.s32.totalorder %v211, 0
        %v214 = vxor.u32 %v209, 2147483648
        %v215 = vsel %vm213, %v208, %v214
        %vm216 = vcmp.eq.s32.totalorder %v211, 2
        %v217 = vxor.u32 %v208, 2147483648
        %v218 = vsel %vm216, %v217, %v209
        %v219 = vsel %vm212, %v215, %v218
        %v220 = vsel %vm210, nan, %v219
        %v221 = vmul.f32 %v116, %v220
        %222 = vst [vmem:[%s47] sm:$0xff] %v221
        %v223 = vand.u32 2147483647, %v117
        %vm224 = vcmp.le.f32.partialorder %v223, 0.7853982
        %vm225 = vcmp.lt.s32.totalorder %v117, 0
        %v226 = vand.u32 %v117, 2139095040
        %v227 = vshrl.u32 %v226, 23
        %v228 = vsub.s32 %v227, 127
        %v229 = vand.u32 2147483647, %v117
        %v230 = vand.u32 %v229, 8388607
        %v231 = vor.u32 %v230, 8388608
        %v232 = vsub.s32 0, %v231
        %v233 = vadd.s32 %v228, 1
        %vm234 = vcmp.gt.s32.totalorder %v233, 0
        %v235 = vsel %vm234, %v233, 0
        %v236 = vshrl.u32 %v235, 5
        %v237 = vand.u32 %v235, 31
        %v238 = vsub.s32 32, %v237
        %v239 = vshrl.u32 683565275, %v238
        %v240 = vshll.u32 683565275, %v237
        %v241 = vshrl.u32 2475754826, %v238
        %v242 = vor.u32 %v240, %v241
        %v243 = vshll.u32 2475754826, %v237
        %v244 = vshrl.u32 2131351028, %v238
        %v245 = vor.u32 %v243, %v244
        %v246 = vshll.u32 2131351028, %v237
        %v247 = vshrl.u32 2102212464, %v238
        %v248 = vor.u32 %v246, %v247
        %v249 = vshll.u32 2102212464, %v237
        %v250 = vshrl.u32 920167782, %v238
        %v251 = vor.u32 %v249, %v250
        %v252 = vshll.u32 920167782, %v237
        %v253 = vshrl.u32 1326507024, %v238
        %v254 = vor.u32 %v252, %v253
        %vm255 = vcmp.lt.s32.totalorder %v236, 1
        %vm256 = vcmp.lt.s32.totalorder %v236, 2
        %vm257 = vcmp.lt.s32.totalorder %v236, 3
        %vm258 = vcmp.lt.s32.totalorder %v236, 4
        %v259 = vsel %vm255, %v239, %v242
        %v260 = vsel %vm258, %v248, 2102212464
        %v261 = vsel %vm257, %v245, %v260
        %v262 = vsel %vm256, %v259, %v261
        %v263 = vsel %vm255, %v242, %v245
        %v264 = vsel %vm258, %v251, 920167782
        %v265 = vsel %vm257, %v248, %v264
        %v266 = vsel %vm256, %v263, %v265
        %v267 = vsel %vm255, %v245, %v248
        %v268 = vsel %vm258, %v254, 1326507024
        %v269 = vsel %vm257, %v251, %v268
        %v270 = vsel %vm256, %v267, %v269
        %v271 = vshll.u32 %v231, 8
        %v272 = vmul.u32.u64.compose %v271, %v270
        %v273 = vextract.low.u32 %v272
        %v274 = vextract.high.u32 %v272
        %v275 = vmul.u32.u64.compose %v271, %v266
        %v276 = vextract.low.u32 %v275
        %v277 = vextract.high.u32 %v275
        %v278 = vmul.u32 %v271, %v262
        %v279 = vadd.s32 %v274, %v276
        %vm280 = vc.u32 %v274, %v276
        %v281 = vadd.s32 %v277, 1
        %v282 = vsel %vm280, %v281, %v277
        %v283 = vadd.s32 %v278, %v282
        %v284 = vadd.s32 %v283, 536870912
        %v285 = vshrl.u32 %v284, 30
        %v286 = vshll.u32 %v285, 30
        %v287 = vsub.s32 %v283, %v286
        %vm288 = vcmp.lt.s32.totalorder %v287, 0
        %v289 = vsub.s32 0, %v287
        %v290 = vsel %vm288, %v289, %v287
        %v291 = vclz %v290
        %v292 = vsub.s32 %v291, 2
        %vm293 = vcmp.gt.s32.totalorder 0, %v292
        %v294 = vsel %vm293, 0, %v292
        %v295 = vsub.s32 32, %v294
        %v296 = vshll.u32 %v287, %v294
        %v297 = vshrl.u32 %v279, %v295
        %v298 = vor.u32 %v296, %v297
        %v299 = vsub.s32 4294967266, %v294
        %v300 = vadd.s32 %v299, 127
        %v301 = vshll.u32 %v300, 23
        %v302 = vor.u32 4788187, %v301
        %v303 = vand.u32 2147483647, %v302
        %v305 = vcvt.s32.f32 %v298
        %v306 = vmul.f32 %v305, %v303
        %v307 = vxor.u32 %v306, 2147483648
        %v308 = vsel %vm225, %v307, %v306
        %v309 = vsub.s32 4, %v285
        %v310 = vsel %vm225, %v309, %v285
        %v311 = vsel %vm224, %v117, %v308
        %v312 = vsel %vm224, 0, %v310
        %v313 = vcosq.f32.pop %v311
        %v314 = vsinq.f32.pop %v311
        %vm315 = vweird.f32 %v117
        %v316 = vadd.s32 %v312, 3
        %v317 = vand.u32 %v316, 3
        %vm318 = vcmp.lt.s32.totalorder %v317, 2
        %vm319 = vcmp.eq.s32.totalorder %v317, 0
        %v320 = vxor.u32 %v314, 2147483648
        %v321 = vsel %vm319, %v313, %v320
        %vm322 = vcmp.eq.s32.totalorder %v317, 2
        %v323 = vxor.u32 %v313, 2147483648
        %v324 = vsel %vm322, %v323, %v314
        %v325 = vsel %vm318, %v321, %v324
        %v326 = vsel %vm315, nan, %v325
        %v327 = vmul.f32 %v116, %v326
        %328 = vst [vmem:[%s47 + $0x8] sm:$0xff] %v327
        %s329 = sand.u32 %s20, 1
        %s330 = scalar_lea.sflag [#allocation5], %s329
        %s331 = sand.u32 %s20, 1
        %s332 = smul.addr %s331, 16
        %s333 = scalar_lea.vmem [#allocation4], %s332
        // Predicated region
        $region13: #{mock_model_forward.1} parent=11 // pred_check
          %p334 = pneg %p26
        $region14: #{mock_model_forward.1} parent=11 // pred_check_branch
          %336 = sbr.rel (%p334) target = $region16
        $region15: #{mock_model_forward.1} parent=11 // pred_region
          %s338 = ssub.s32 256, 256
          %339 = vsyncadd %s330, %s338
          %s340 = smul.addr %s11, 2
          %s341 = smul.addr %s340, 128
          %s342 = scalar_lea.hbm %s1, %s341
          %s344 = sshll.u32 %s333, 4
          %s345 = int_to_ptr.vmem [resolvable:$true] %s344
          %347 = dma.vmem_to_hbm [thread:$0]  %s345, 256, %s342, %s330
        $region16: #{mock_model_forward.1} parent=11 // pred_fallthru
          _
      $region12: #{mock_model_forward.1} parent=5 // pred_fallthru
        _
      %p348 = scmp.le.s32.totalorder 1, %s11
      // Predicated region
      $region17: #{mock_model_forward.1} parent=5 // pred_check
        %p349 = pneg %p348
      $region18: #{mock_model_forward.1} parent=5 // pred_check_branch
        %351 = sbr.rel (%p349) target = $region20
      $region19: #{mock_model_forward.1} parent=5 // pred_region
        %s352 = ssub.s32 %s11, 1
        // Predicated region
        $region21: #{mock_model_forward.1} parent=19 // pred_check
          %p353 = pneg %p32
        $region22: #{mock_model_forward.1} parent=19 // pred_check_branch
          %355 = sbr.rel (%p353) target = $region24
        $region23: #{mock_model_forward.1} parent=19 // pred_region
          %s356 = sand.u32 %s23, 1
          %s357 = scalar_lea.sflag [#allocation5], %s356
          %s358 = sand.u32 %s23, 1
          %s359 = smul.addr %s358, 16
          %s360 = scalar_lea.vmem [#allocation4], %s359
          %361 = dma.done %s357, 256
        $region24: #{mock_model_forward.1} parent=19 // pred_fallthru
          _
      $region20: #{mock_model_forward.1} parent=5 // pred_fallthru
        _
    $region6: #{mock_model_forward.1} parent=1 // loop_footer
      %s15 = sadd.s32 1, %s11
    $region7: #{mock_model_forward.1} parent=1 // loop_footer_branch
      %10 = sbr.rel target = $region3
    $region8: #{mock_model_forward.1} parent=1 // loop_exit
      _
    %362 = vsyncpa [#allocation5], 1
    %s363 = scalar_lea.sflag [#allocation5], 1
    %364 = vsyncpa %s363, 1

</llo_original>
